<compile_context>
chip_gen: v6e
topology: v6e:2x2x1
jax: 0.10.0
libtpu: 0.0.40
codegen_flags: <defaults>
</compile_context>

<pallas_src>
import jax
import jax.numpy as jnp
from jax.experimental import pallas as pl
from jax.experimental.pallas import tpu as pltpu

PACK = 8  # batch rows folded into the lane axis (one vreg sublane height)


def mlp_kernel(x_ref, w1_ref, b1_ref, w2_ref, b2_ref, o_ref):
    """Fused packed-MLP tile: x @ blockdiag(W1) + b1 -> ReLU -> @ blockdiag(W2) + b2."""
    h = jnp.dot(x_ref[...], w1_ref[...], preferred_element_type=jnp.float32)
    h = jnp.maximum(h + b1_ref[...], 0.0)
    y = jnp.dot(h, w2_ref[...], preferred_element_type=jnp.float32) + b2_ref[...]
    o_ref[...] = y.astype(o_ref.dtype)


def pack_params(w1, b1, w2, b2):
    """One-time parameter prep (hoisted out of the per-forward hot path).

    PACK consecutive batch rows are folded into the lane axis, so the weights
    are expanded to block-diagonal form and the biases tiled PACK times.  This
    is an exact reformulation of the two Linear layers (~50 KiB at these dims),
    paid once next to the params instead of on every forward call.
    """
    h = w1.shape[-1]
    d_out = w2.shape[-1]
    eye = jnp.eye(PACK, dtype=w1.dtype)
    w1b = jnp.kron(eye, w1)                            # (PACK*D_in, PACK*H)
    w2b = jnp.kron(eye, w2)                            # (PACK*H,  PACK*D_out)
    b1b = jnp.tile(b1.reshape(1, h), (1, PACK))        # (1, PACK*H)
    b2b = jnp.tile(b2.reshape(1, d_out), (1, PACK))    # (1, PACK*D_out)
    return w1b, b1b, w2b, b2b


def _choose_tile_rows(rows, min_tile_rows, max_tile_rows):
    """Packed-row tile selection.

    Big batches get 512-2048 packed rows per step (4K-16K batch rows) to
    amortize per-step overhead; mid-size batches (rows >= 2*min_tile_rows) are
    split into >= 2 grid steps (tile ~ rows/2, rounded up to 8 sublanes) so the
    v7x megacore shards the "parallel" axis across both TensorCores; small
    batches use a single full-dim block (legal for any row count).
    """
    if rows < 2 * min_tile_rows:
        return rows
    half = -(-rows // 2)            # ceil(rows / 2)
    half = -(-half // 8) * 8        # round up to a multiple of 8 sublanes
    return min(max_tile_rows, half)


def mlp_forward(x, packed_params, *, min_tile_rows=512, max_tile_rows=2048):
    """ReLU(x @ W1 + b1) @ W2 + b2,  x: [B, D_in] -> [B, D_out] (f32, matches torch)."""
    w1b, b1b, w2b, b2b = packed_params
    B, D_in = x.shape
    PH = w1b.shape[-1]              # PACK * hidden
    PD_out = w2b.shape[-1]          # PACK * D_out
    D_out = PD_out // PACK

    # Fold PACK batch rows per lane-axis row.  When B % PACK == 0 this is a free
    # row-major reshape (zero copies); otherwise pad only the sub-PACK tail
    # (< 8 rows).  No padding to tile boundaries: the grid uses cdiv and Pallas
    # clips the ragged last row-tile.
    rows = pl.cdiv(B, PACK)
    if rows * PACK != B:
        x = jnp.pad(x, ((0, rows * PACK - B), (0, 0)))
    x_packed = x.reshape(rows, PACK * D_in)

    tile_rows = _choose_tile_rows(rows, min_tile_rows, max_tile_rows)
    grid = (pl.cdiv(rows, tile_rows),)

    # Per-step VMEM at the 2048-row cap: double-buffered x (2x2 MiB) + out
    # (2x1 MiB) + constant-index weight/bias blocks (~50 KiB, never re-DMA'd)
    # ~= 6 MiB -- well inside default scoped VMEM on v5e/v6e/v7x.
    out_packed = pl.pallas_call(
        mlp_kernel,
        out_shape=jax.ShapeDtypeStruct((rows, PD_out), x.dtype),
        grid_spec=pl.GridSpec(
            grid=grid,
            in_specs=[
                pl.BlockSpec((tile_rows, PACK * D_in), lambda i: (i, 0)),  # packed x tile
                pl.BlockSpec((PACK * D_in, PH),        lambda i: (0, 0)),  # blockdiag W1 (resident)
                pl.BlockSpec((1, PH),                  lambda i: (0, 0)),  # tiled b1
                pl.BlockSpec((PH, PD_out),             lambda i: (0, 0)),  # blockdiag W2 (resident)
                pl.BlockSpec((1, PD_out),              lambda i: (0, 0)),  # tiled b2
            ],
            out_specs=pl.BlockSpec((tile_rows, PD_out), lambda i: (i, 0)),
        ),
        compiler_params=pltpu.CompilerParams(
            dimension_semantics=("parallel",)),  # megacore-shardable row tiles on v7x
    )(x_packed, w1b, b1b, w2b, b2b)

    # Undo the packing (free row-major reshape); slice only if a tail pad was added.
    out = out_packed.reshape(rows * PACK, D_out)
    return out if rows * PACK == B else out[:B]


def _reference(x, w1, b1, w2, b2):
    return jnp.maximum(x @ w1 + b1.reshape(1, -1), 0.0) @ w2 + b2.reshape(1, -1)


if __name__ == "__main__":
    # Module config: input_dim=32, output_dim=16, hidden_dim=4 (ctor default).
    input_dim, hidden_dim, output_dim = 32, 4, 16

    key = jax.random.PRNGKey(0)
    kx, kw1, kb1, kw2, kb2, kx2, kx3 = jax.random.split(key, 7)

    # Deterministic parameter init (uniform like torch default, stored as [in, out]).
    bound1 = 1.0 / (input_dim ** 0.5)
    w1 = jax.random.uniform(kw1, (input_dim, hidden_dim), jnp.float32, -bound1, bound1)
    b1 = jax.random.uniform(kb1, (1, hidden_dim), jnp.float32, -bound1, bound1)
    bound2 = 1.0 / (hidden_dim ** 0.5)
    w2 = jax.random.uniform(kw2, (hidden_dim, output_dim), jnp.float32, -bound2, bound2)
    b2 = jax.random.uniform(kb2, (1, output_dim), jnp.float32, -bound2, bound2)

    # One-time packed-parameter prep (kron/tile hoisted out of the forward path).
    packed = jax.tree_util.tree_map(jax.block_until_ready, pack_params(w1, b1, w2, b2))

    fwd = jax.jit(lambda xx: mlp_forward(xx, packed))

    # Primary small case (batch=8, matches the original test harness): zero-copy path.
    x = jax.random.normal(kx, (8, input_dim), dtype=jnp.float32)
    out = jax.block_until_ready(fwd(x))
    assert out.shape == (8, output_dim)
    assert jnp.allclose(out, _reference(x, w1, b1, w2, b2), atol=1e-5, rtol=1e-5)

    # Ragged batch (not a multiple of PACK): sub-8-row tail pad + slice.
    x2 = jax.random.normal(kx2, (50, input_dim), dtype=jnp.float32)
    out2 = jax.block_until_ready(fwd(x2))
    assert out2.shape == (50, output_dim)
    assert jnp.allclose(out2, _reference(x2, w1, b1, w2, b2), atol=1e-5, rtol=1e-5)

    # Multi-step grid with a ragged (clipped) last row-tile, exercised at a small
    # shape by shrinking the tile thresholds (defaults use 512-2048-row tiles).
    x3 = jax.random.normal(kx3, (136, input_dim), dtype=jnp.float32)  # 17 packed rows -> 3 tiles of 8
    out3 = jax.block_until_ready(
        mlp_forward(x3, packed, min_tile_rows=8, max_tile_rows=8))
    assert out3.shape == (136, output_dim)
    assert jnp.allclose(out3, _reference(x3, w1, b1, w2, b2), atol=1e-5, rtol=1e-5)

    print("KERNEL_OK")
</pallas_src>

<mosaic_0001>
module attributes {stable_mosaic.version = 11 : i64} {
  func.func @mlp_kernel(%arg0: i32, %arg1: memref<1x256xf32, #tpu.memory_space<vmem>>, %arg2: memref<256x32xf32, #tpu.memory_space<vmem>>, %arg3: memref<1x32xf32, #tpu.memory_space<vmem>>, %arg4: memref<32x128xf32, #tpu.memory_space<vmem>>, %arg5: memref<1x128xf32, #tpu.memory_space<vmem>>, %arg6: memref<1x128xf32, #tpu.memory_space<vmem>>) attributes {dimension_semantics = [#tpu.dimension_semantics<parallel>], iteration_bounds = array<i64: 1>, scalar_prefetch = 0 : i64, scratch_operands = 0 : i64, tpu.core_type = #tpu.core_type<tc>, window_params = [{transform_indices = @transform_0, window_bounds = array<i64: 1, 256>}, {pipeline_mode = #tpu.pipeline_mode<synchronous>, transform_indices = @transform_1, window_bounds = array<i64: 256, 32>}, {pipeline_mode = #tpu.pipeline_mode<synchronous>, transform_indices = @transform_2, window_bounds = array<i64: 1, 32>}, {pipeline_mode = #tpu.pipeline_mode<synchronous>, transform_indices = @transform_3, window_bounds = array<i64: 32, 128>}, {pipeline_mode = #tpu.pipeline_mode<synchronous>, transform_indices = @transform_4, window_bounds = array<i64: 1, 128>}, {transform_indices = @transform_5, window_bounds = array<i64: 1, 128>}]} {
    %c0 = arith.constant 0 : index
    %c0_0 = arith.constant 0 : index
    %0 = vector.load %arg1[%c0, %c0_0] : memref<1x256xf32, #tpu.memory_space<vmem>>, vector<1x256xf32>
    %c0_1 = arith.constant 0 : index
    %c0_2 = arith.constant 0 : index
    %1 = vector.load %arg2[%c0_1, %c0_2] : memref<256x32xf32, #tpu.memory_space<vmem>>, vector<256x32xf32>
    %cst = arith.constant dense<0.000000e+00> : vector<1x32xf32>
    %2 = tpu.matmul %0, %1, %cst {dimension_numbers = #tpu.dot_dimension_numbers<[1], [0], [0], [1], [0, 0, 1, 1], [], []>} : vector<1x256xf32>, vector<256x32xf32>, vector<1x32xf32> -> vector<1x32xf32>
    %c0_3 = arith.constant 0 : index
    %c0_4 = arith.constant 0 : index
    %3 = vector.load %arg3[%c0_3, %c0_4] : memref<1x32xf32, #tpu.memory_space<vmem>>, vector<1x32xf32>
    %4 = arith.addf %2, %3 : vector<1x32xf32>
    %cst_5 = arith.constant 0.000000e+00 : f32
    %5 = vector.broadcast %cst_5 : f32 to vector<1x32xf32>
    %6 = arith.maximumf %4, %5 : vector<1x32xf32>
    %c0_6 = arith.constant 0 : index
    %c0_7 = arith.constant 0 : index
    %7 = vector.load %arg4[%c0_6, %c0_7] : memref<32x128xf32, #tpu.memory_space<vmem>>, vector<32x128xf32>
    %cst_8 = arith.constant dense<0.000000e+00> : vector<1x128xf32>
    %8 = tpu.matmul %6, %7, %cst_8 {dimension_numbers = #tpu.dot_dimension_numbers<[1], [0], [0], [1], [0, 0, 1, 1], [], []>} : vector<1x32xf32>, vector<32x128xf32>, vector<1x128xf32> -> vector<1x128xf32>
    %c0_9 = arith.constant 0 : index
    %c0_10 = arith.constant 0 : index
    %9 = vector.load %arg5[%c0_9, %c0_10] : memref<1x128xf32, #tpu.memory_space<vmem>>, vector<1x128xf32>
    %10 = arith.addf %8, %9 : vector<1x128xf32>
    %c0_11 = arith.constant 0 : index
    %c0_12 = arith.constant 0 : index
    %11 = vector.load %arg6[%c0_11, %c0_12] : memref<1x128xf32, #tpu.memory_space<vmem>>, vector<1x128xf32>
    tpu.vector_store %arg6[%c0_11, %c0_12], %10 {strides = array<i32>} : memref<1x128xf32, #tpu.memory_space<vmem>>, vector<1x128xf32>,
    return
  }
  func.func @transform_0(%arg0: i32) -> (i32, i32) {
    %c0_i32 = arith.constant 0 : i32
    %c0_i32_0 = arith.constant 0 : i32
    return %arg0, %c0_i32 : i32, i32
  }
  func.func @transform_1(%arg0: i32) -> (i32, i32) {
    %c0_i32 = arith.constant 0 : i32
    %c0_i32_0 = arith.constant 0 : i32
    %c0_i32_1 = arith.constant 0 : i32
    return %c0_i32, %c0_i32_0 : i32, i32
  }
  func.func @transform_2(%arg0: i32) -> (i32, i32) {
    %c0_i32 = arith.constant 0 : i32
    %c0_i32_0 = arith.constant 0 : i32
    %c0_i32_1 = arith.constant 0 : i32
    return %c0_i32, %c0_i32_0 : i32, i32
  }
  func.func @transform_3(%arg0: i32) -> (i32, i32) {
    %c0_i32 = arith.constant 0 : i32
    %c0_i32_0 = arith.constant 0 : i32
    %c0_i32_1 = arith.constant 0 : i32
    return %c0_i32, %c0_i32_0 : i32, i32
  }
  func.func @transform_4(%arg0: i32) -> (i32, i32) {
    %c0_i32 = arith.constant 0 : i32
    %c0_i32_0 = arith.constant 0 : i32
    %c0_i32_1 = arith.constant 0 : i32
    return %c0_i32, %c0_i32_0 : i32, i32
  }
  func.func @transform_5(%arg0: i32) -> (i32, i32) {
    %c0_i32 = arith.constant 0 : i32
    %c0_i32_0 = arith.constant 0 : i32
    return %arg0, %c0_i32 : i32, i32
  }
}

</mosaic_0001>

<llo_original>
// kernel: _lambda_.1
$region0: #{_lambda_.1}
  #allocation0 [shape = 'u32[]', space=smem, size = 0x4, offset = 0x4, fixed_abs, tag = 'smem constant byte address 0x4 - core index']
  #allocation1 [shape = 'u32[144,128]{1,0:T(1,128)}', space=vmem, size = 0x12000, scoped, tag = 'internal scratch']
  %s0 = inlined_call_operand.vmem [shape: f32[1,256], index: 0, kind: input, shape index: {}]
  %s1 = inlined_call_operand.hbm [shape: f32[256,32], index: 1, kind: input, shape index: {}]
  %s2 = inlined_call_operand.vmem [shape: f32[1,32], index: 2, kind: input, shape index: {}]
  %s3 = inlined_call_operand.hbm [shape: f32[32,128], index: 3, kind: input, shape index: {}]
  %s4 = inlined_call_operand.vmem [shape: f32[1,128], index: 4, kind: input, shape index: {}]
  %s5 = inlined_call_operand.vmem [shape: f32[1,128], index: 5, kind: output, shape index: {}]
  %s6 = sld [smem:[#allocation0]]
  $region38: #{_lambda_.1} parent=0
    _
  %s8 = ssub.s32 1, %s6
  %s9 = scalar_select 0, %s8, %s6
  $region1: #{_lambda_.1} parent=0
    #allocation2 [shape = 'u8[131072]{0}', space=vmem, size = 0x20000, scoped, tag = 'input window, operand 1, single buffered']
    #allocation3 [shape = 's32[1]{0}', space=sflag, size = 0x4, scoped, tag = 'scoped memory for _lambda_.1']
    #allocation4 [shape = 'u8[16384]{0}', space=vmem, size = 0x4000, scoped, tag = 'input window, operand 3, single buffered']
    #allocation5 [shape = 's32[1]{0}', space=sflag, size = 0x4, scoped, tag = 'scoped memory for _lambda_.1']
    %10 = vsyncpa [#allocation3], 0
    %11 = vsyncpa [#allocation5], 0
    // Predicated region
    $region2: #{_lambda_.1} parent=1 // pred_check
      _
    $region3: #{_lambda_.1} parent=1 // pred_check_branch
      %13 = sbr.rel (0) target = $region5
    $region4: #{_lambda_.1} parent=1 // pred_region
      _
    $region5: #{_lambda_.1} parent=1 // pred_fallthru
      _
    // Predicated region
    $region6: #{_lambda_.1} parent=1 // pred_check
      _
    $region7: #{_lambda_.1} parent=1 // pred_check_branch
      %15 = sbr.rel (0) target = $region9
    $region8: #{_lambda_.1} parent=1 // pred_region
      %s17 = ssub.s32 4096, 4096
      %18 = vsyncadd [#allocation3], %s17
      %s19 = sshll.u32 [#allocation2], 4
      %s20 = int_to_ptr.vmem [resolvable:$true] %s19
      %25 = dma.hbm_to_vmem [thread:$0]  %s1, 4096, %s20, [#allocation3], 128, 128, 8
    $region9: #{_lambda_.1} parent=1 // pred_fallthru
      _
    // Predicated region
    $region10: #{_lambda_.1} parent=1 // pred_check
      _
    $region11: #{_lambda_.1} parent=1 // pred_check_branch
      %27 = sbr.rel (0) target = $region13
    $region12: #{_lambda_.1} parent=1 // pred_region
      _
    $region13: #{_lambda_.1} parent=1 // pred_fallthru
      _
    // Predicated region
    $region14: #{_lambda_.1} parent=1 // pred_check
      _
    $region15: #{_lambda_.1} parent=1 // pred_check_branch
      %29 = sbr.rel (0) target = $region17
    $region16: #{_lambda_.1} parent=1 // pred_region
      %s31 = ssub.s32 512, 512
      %32 = vsyncadd [#allocation5], %s31
      %s33 = sshll.u32 [#allocation4], 4
      %s34 = int_to_ptr.vmem [resolvable:$true] %s33
      %39 = dma.hbm_to_vmem [thread:$0]  %s3, 512, %s34, [#allocation5], 128, 128, 8
    $region17: #{_lambda_.1} parent=1 // pred_fallthru
      _
    // Predicated region
    $region18: #{_lambda_.1} parent=1 // pred_check
      _
    $region19: #{_lambda_.1} parent=1 // pred_check_branch
      %41 = sbr.rel (0) target = $region21
    $region20: #{_lambda_.1} parent=1 // pred_region
      _
    $region21: #{_lambda_.1} parent=1 // pred_fallthru
      _
    // Predicated region
    $region22: #{_lambda_.1} parent=1 // pred_check
      _
    $region23: #{_lambda_.1} parent=1 // pred_check_branch
      %43 = sbr.rel (0) target = $region25
    $region24: #{_lambda_.1} parent=1 // pred_region
      %44 = dma.done [#allocation3], 4096
    $region25: #{_lambda_.1} parent=1 // pred_fallthru
      _
    // Predicated region
    $region26: #{_lambda_.1} parent=1 // pred_check
      _
    $region27: #{_lambda_.1} parent=1 // pred_check_branch
      %46 = sbr.rel (0) target = $region29
    $region28: #{_lambda_.1} parent=1 // pred_region
      %47 = dma.done [#allocation5], 512
    $region29: #{_lambda_.1} parent=1 // pred_fallthru
      _
    %v48 = vld [vmem:[%s0] sm:$0x3]
    %v49 = vld [vmem:[#allocation2] sm:$0xff]
    %v50 = vld [vmem:[#allocation2 + $0x8] sm:$0xff]
    %v51 = vld [vmem:[#allocation2 + $0x10] sm:$0xff]
    %v52 = vld [vmem:[#allocation2 + $0x18] sm:$0xff]
    %v53 = vld [vmem:[#allocation2 + $0x20] sm:$0xff]
    %v54 = vld [vmem:[#allocation2 + $0x28] sm:$0xff]
    %v55 = vld [vmem:[#allocation2 + $0x30] sm:$0xff]
    %v56 = vld [vmem:[#allocation2 + $0x38] sm:$0xff]
    %v57 = vld [vmem:[#allocation2 + $0x40] sm:$0xff]
    %v58 = vld [vmem:[#allocation2 + $0x48] sm:$0xff]
    %v59 = vld [vmem:[#allocation2 + $0x50] sm:$0xff]
    %v60 = vld [vmem:[#allocation2 + $0x58] sm:$0xff]
    %v61 = vld [vmem:[#allocation2 + $0x60] sm:$0xff]
    %v62 = vld [vmem:[#allocation2 + $0x68] sm:$0xff]
    %v63 = vld [vmem:[#allocation2 + $0x70] sm:$0xff]
    %v64 = vld [vmem:[#allocation2 + $0x78] sm:$0xff]
    %v65 = vld [vmem:[#allocation2 + $0x80] sm:$0xff]
    %v66 = vld [vmem:[#allocation2 + $0x88] sm:$0xff]
    %v67 = vld [vmem:[#allocation2 + $0x90] sm:$0xff]
    %v68 = vld [vmem:[#allocation2 + $0x98] sm:$0xff]
    %v69 = vld [vmem:[#allocation2 + $0xa0] sm:$0xff]
    %v70 = vld [vmem:[#allocation2 + $0xa8] sm:$0xff]
    %v71 = vld [vmem:[#allocation2 + $0xb0] sm:$0xff]
    %v72 = vld [vmem:[#allocation2 + $0xb8] sm:$0xff]
    %v73 = vld [vmem:[#allocation2 + $0xc0] sm:$0xff]
    %v74 = vld [vmem:[#allocation2 + $0xc8] sm:$0xff]
    %v75 = vld [vmem:[#allocation2 + $0xd0] sm:$0xff]
    %v76 = vld [vmem:[#allocation2 + $0xd8] sm:$0xff]
    %v77 = vld [vmem:[#allocation2 + $0xe0] sm:$0xff]
    %v78 = vld [vmem:[#allocation2 + $0xe8] sm:$0xff]
    %v79 = vld [vmem:[#allocation2 + $0xf0] sm:$0xff]
    %v80 = vld [vmem:[#allocation2 + $0xf8] sm:$0xff]
    %v81 = vld [vmem:[%s2] sm:$0x1]
    %v83 = vlaneseq
    %v84 = vshrl.u32 %v83, 7
    %v85 = vsub.s32 0, %v84
    %v86 = vrot.slane %v48, %v85
    %v87 = vlaneseq
    %v88 = vshrl.u32 %v87, 7
    %v89 = vsub.s32 1, %v88
    %v90 = vrot.slane %v48, %v89
    %93 = vmatprep.subr.mxu0 0.0
    %94 = vmatpush1.msra.mxu0 %v64
    %95 = vmatprep.subr.mxu0 0.0
    %96 = vmatpush1.msra.mxu0 %v63
    %97 = vmatprep.subr.mxu0 0.0
    %98 = vmatpush1.msra.mxu0 %v62
    %99 = vmatprep.subr.mxu0 0.0
    %100 = vmatpush1.msra.mxu0 %v61
    %101 = vmatprep.subr.mxu0 0.0
    %102 = vmatpush1.msra.mxu0 %v60
    %103 = vmatprep.subr.mxu0 0.0
    %104 = vmatpush1.msra.mxu0 %v59
    %105 = vmatprep.subr.mxu0 0.0
    %106 = vmatpush1.msra.mxu0 %v58
    %107 = vmatprep.subr.mxu0 0.0
    %108 = vmatpush1.msra.mxu0 %v57
    %109 = vmatprep.subr.mxu0 0.0
    %110 = vmatpush1.msra.mxu0 %v56
    %111 = vmatprep.subr.mxu0 0.0
    %112 = vmatpush1.msra.mxu0 %v55
    %113 = vmatprep.subr.mxu0 0.0
    %114 = vmatpush1.msra.mxu0 %v54
    %115 = vmatprep.subr.mxu0 0.0
    %116 = vmatpush1.msra.mxu0 %v53
    %117 = vmatprep.subr.mxu0 0.0
    %118 = vmatpush1.msra.mxu0 %v52
    %119 = vmatprep.subr.mxu0 0.0
    %120 = vmatpush1.msra.mxu0 %v51
    %121 = vmatprep.subr.mxu0 0.0
    %122 = vmatpush1.msra.mxu0 %v50
    %123 = vmatprep.subr.mxu0 0.0
    %124 = vmatpush1.msra.mxu0 %v49
    %125 = vmatprep.subr.mxu0 0.0
    %126 = vmatpush2.msra.mxu0 %v80
    %127 = vmatprep.subr.mxu0 0.0
    %128 = vmatpush2.msra.mxu0 %v79
    %129 = vmatprep.subr.mxu0 0.0
    %130 = vmatpush2.msra.mxu0 %v78
    %131 = vmatprep.subr.mxu0 0.0
    %132 = vmatpush2.msra.mxu0 %v77
    %133 = vmatprep.subr.mxu0 0.0
    %134 = vmatpush2.msra.mxu0 %v76
    %135 = vmatprep.subr.mxu0 0.0
    %136 = vmatpush2.msra.mxu0 %v75
    %137 = vmatprep.subr.mxu0 0.0
    %138 = vmatpush2.msra.mxu0 %v74
    %139 = vmatprep.subr.mxu0 0.0
    %140 = vmatpush2.msra.mxu0 %v73
    %141 = vmatprep.subr.mxu0 0.0
    %142 = vmatpush2.msra.mxu0 %v72
    %143 = vmatprep.subr.mxu0 0.0
    %144 = vmatpush2.msra.mxu0 %v71
    %145 = vmatprep.subr.mxu0 0.0
    %146 = vmatpush2.msra.mxu0 %v70
    %147 = vmatprep.subr.mxu0 0.0
    %148 = vmatpush2.msra.mxu0 %v69
    %149 = vmatprep.subr.mxu0 0.0
    %150 = vmatpush2.msra.mxu0 %v68
    %151 = vmatprep.subr.mxu0 0.0
    %152 = vmatpush2.msra.mxu0 %v67
    %153 = vmatprep.subr.mxu0 0.0
    %154 = vmatpush2.msra.mxu0 %v66
    %155 = vmatprep.subr.mxu0 0.0
    %156 = vmatpush2.msra.mxu0 %v65
    %157 = vmatprep.mubr.f32.mxu0 %v90
    %158 = vmatmul.mubr.f32.gmra.mxu0 %v86
    %v159 = vpop.f32.mrf.mxu0
    %v160 = vadd.f32 %v81, %v159
    %v161 = vpop.f32.mrf.mxu0
    %162 = vdwg.mxu0
    %v163 = vmax.f32 %v160, 0.0
    %v164 = vld [vmem:[#allocation4] sm:$0xff]
    %v165 = vld [vmem:[#allocation4 + $0x8] sm:$0xff]
    %v166 = vld [vmem:[#allocation4 + $0x10] sm:$0xff]
    %v167 = vld [vmem:[#allocation4 + $0x18] sm:$0xff]
    %v168 = vld [vmem:[%s4] sm:$0x1]
    %vm169 = vcmask 261120
    %v171 = vsel %vm169, %v163, 0
    %173 = vmatprep.subr.mxu0 0.0
    %174 = vmatpush1.msra.mxu0 0.0
    %175 = vmatprep.subr.mxu0 0.0
    %176 = vmatpush1.msra.mxu0 0.0
    %177 = vmatprep.subr.mxu0 0.0
    %178 = vmatpush1.msra.mxu0 0.0
    %179 = vmatprep.subr.mxu0 0.0
    %180 = vmatpush1.msra.mxu0 0.0
    %181 = vmatprep.subr.mxu0 0.0
    %182 = vmatpush1.msra.mxu0 0.0
    %183 = vmatprep.subr.mxu0 0.0
    %184 = vmatpush1.msra.mxu0 0.0
    %185 = vmatprep.subr.mxu0 0.0
    %186 = vmatpush1.msra.mxu0 0.0
    %187 = vmatprep.subr.mxu0 0.0
    %188 = vmatpush1.msra.mxu0 0.0
    %189 = vmatprep.subr.mxu0 0.0
    %190 = vmatpush1.msra.mxu0 0.0
    %191 = vmatprep.subr.mxu0 0.0
    %192 = vmatpush1.msra.mxu0 0.0
    %193 = vmatprep.subr.mxu0 0.0
    %194 = vmatpush1.msra.mxu0 0.0
    %195 = vmatprep.subr.mxu0 0.0
    %196 = vmatpush1.msra.mxu0 0.0
    %197 = vmatprep.subr.mxu0 0.0
    %198 = vmatpush1.msra.mxu0 %v167
    %199 = vmatprep.subr.mxu0 0.0
    %200 = vmatpush1.msra.mxu0 %v166
    %201 = vmatprep.subr.mxu0 0.0
    %202 = vmatpush1.msra.mxu0 %v165
    %203 = vmatprep.subr.mxu0 0.0
    %204 = vmatpush1.msra.mxu0 %v164
    %205 = vmatprep.subr.mxu0 0.0
    %206 = vmatpush2.msra.mxu0 0.0
    %207 = vmatprep.subr.mxu0 0.0
    %208 = vmatpush2.msra.mxu0 0.0
    %209 = vmatprep.subr.mxu0 0.0
    %210 = vmatpush2.msra.mxu0 0.0
    %211 = vmatprep.subr.mxu0 0.0
    %212 = vmatpush2.msra.mxu0 0.0
    %213 = vmatprep.subr.mxu0 0.0
    %214 = vmatpush2.msra.mxu0 0.0
    %215 = vmatprep.subr.mxu0 0.0
    %216 = vmatpush2.msra.mxu0 0.0
    %217 = vmatprep.subr.mxu0 0.0
    %218 = vmatpush2.msra.mxu0 0.0
    %219 = vmatprep.subr.mxu0 0.0
    %220 = vmatpush2.msra.mxu0 0.0
    %221 = vmatprep.subr.mxu0 0.0
    %222 = vmatpush2.msra.mxu0 0.0
    %223 = vmatprep.subr.mxu0 0.0
    %224 = vmatpush2.msra.mxu0 0.0
    %225 = vmatprep.subr.mxu0 0.0
    %226 = vmatpush2.msra.mxu0 0.0
    %227 = vmatprep.subr.mxu0 0.0
    %228 = vmatpush2.msra.mxu0 0.0
    %229 = vmatprep.subr.mxu0 0.0
    %230 = vmatpush2.msra.mxu0 0.0
    %231 = vmatprep.subr.mxu0 0.0
    %232 = vmatpush2.msra.mxu0 0.0
    %233 = vmatprep.subr.mxu0 0.0
    %234 = vmatpush2.msra.mxu0 0.0
    %235 = vmatprep.subr.mxu0 0.0
    %236 = vmatpush2.msra.mxu0 0.0
    %237 = vmatprep.mubr.f32.mxu0 0.0
    %238 = vmatmul.mubr.f32.gmra.mxu0 %v171
    %v239 = vpop.f32.mrf.mxu0
    %v240 = vadd.f32 %v168, %v239
    %v241 = vpop.f32.mrf.mxu0
    %242 = vdwg.mxu0
    %243 = vst [vmem:[%s5] sm:$0x1] %v240
    // Predicated region
    $region30: #{_lambda_.1} parent=1 // pred_check
      _
    $region31: #{_lambda_.1} parent=1 // pred_check_branch
      %245 = sbr.rel (0) target = $region33
    $region32: #{_lambda_.1} parent=1 // pred_region
      _
    $region33: #{_lambda_.1} parent=1 // pred_fallthru
      _
    // Predicated region
    $region34: #{_lambda_.1} parent=1 // pred_check
      _
    $region35: #{_lambda_.1} parent=1 // pred_check_branch
      %247 = sbr.rel (0) target = $region37
    $region36: #{_lambda_.1} parent=1 // pred_region
      _
    $region37: #{_lambda_.1} parent=1 // pred_fallthru
      _
    %248 = vsyncpa [#allocation3], 1
    %249 = vsyncpa [#allocation5], 1

</llo_original>
